<compile_context>
chip_gen: v7x
topology: tpu7x:2x2x1
jax: 0.10.0
libtpu: 0.0.40
codegen_flags: <defaults>
</compile_context>

<pallas_src>
import functools

import jax
import jax.numpy as jnp
from jax import lax
from jax.experimental import pallas as pl
from jax.experimental.pallas import tpu as pltpu


def _attn_weights_kernel(x_ref, wqk_ref, o_ref, qk_ref, *, group_size, head_dim):
    # x_ref:   (1, N, C)        current batch, compute dtype
    # wqk_ref: (1, C, 2*G*hd)   this head-group's [Wq^T*scale | Wk^T] columns
    # o_ref:   (1, G, N, N)     attention weights for this (batch, head-group)
    # qk_ref:  (N, 2*G*hd)      VMEM scratch staging the q|k projection
    x = x_ref[0]                     # (N, C)
    w_g = wqk_ref[0]                 # (C, 2*G*hd)

    # One lane-dense projection of q and k for this head group, f32 accumulation,
    # staged in VMEM so the per-head column slices below come from the load unit.
    qk_ref[...] = jnp.dot(
        x, w_g, preferred_element_type=jnp.float32).astype(qk_ref.dtype)

    ghd = group_size * head_dim
    for i in range(group_size):
        lo = i * head_dim
        q_h = qk_ref[:, lo:lo + head_dim]                    # (N, hd), scale folded
        k_h = qk_ref[:, ghd + lo:ghd + lo + head_dim]        # (N, hd)

        # q_h @ k_h^T without materializing a transposed copy of k.
        s = lax.dot_general(
            q_h, k_h,
            dimension_numbers=(((1,), (1,)), ((), ())),
            preferred_element_type=jnp.float32,
        )                                                    # (N, N) f32

        # Numerically-stable softmax over the last axis, in f32.
        s = s - jnp.max(s, axis=-1, keepdims=True)
        e = jnp.exp(s)
        inv = pl.reciprocal(jnp.sum(e, axis=-1, keepdims=True), approx=True)

        # Immediate per-head store: bounds live ranges, lane-dense (N, N) slab,
        # already in the final (B, H, N, N) layout (no wrapper transpose).
        o_ref[0, i] = (e * inv).astype(o_ref.dtype)


def _pick_group_size(num_heads, head_dim, seq_len, out_itemsize,
                     out_block_budget_bytes=4 * 1024 * 1024):
    """Largest head-group size whose double-buffered output block fits the budget.

    Prefers groups whose packed q|k width (2*G*hd) is a 128-lane multiple.
    """
    divisors = [g for g in range(1, num_heads + 1) if num_heads % g == 0]
    aligned = [g for g in divisors if (2 * g * head_dim) % 128 == 0]
    candidates = aligned if aligned else divisors
    best = candidates[0]
    for g in candidates:
        if 2 * g * seq_len * seq_len * out_itemsize <= out_block_budget_bytes:
            best = g
    return best


def get_attention_weights(x, w_qkv, num_heads, *, compute_dtype=None,
                          out_dtype=None, group_size=None):
    """x: (B, N, C); w_qkv: (3*C, C) as in nn.Linear(dim, 3*dim, bias=False).

    compute_dtype: dtype fed to the MXU matmuls. jnp.bfloat16 is recommended on
      v5e/v6e/v7x (halves x/weight DMA bytes); accumulation/softmax stay f32.
    out_dtype: attention-weight storage dtype (values in [0,1]); bf16 halves the
      dominant HBM write stream. Defaults to x.dtype (PyTorch returns f32).
    group_size: heads computed per grid step; auto-picked if None.
    """
    B, N, C = x.shape
    assert C % num_heads == 0
    hd = C // num_heads
    scale = hd ** (-0.5)
    if compute_dtype is None:
        compute_dtype = x.dtype
    out_dtype = jnp.dtype(out_dtype if out_dtype is not None else x.dtype)

    if group_size is None:
        group_size = _pick_group_size(num_heads, hd, N, out_dtype.itemsize)
    assert num_heads % group_size == 0
    num_groups = num_heads // group_size
    gw = 2 * group_size * hd  # packed q|k width per group

    # nn.Linear computes x @ W^T. Rows 0:C of w_qkv are the q projection,
    # rows C:2C are the k projection. Pre-transpose once host-side, fold the
    # softmax scale into the q weights, and pack group-major as
    # (num_groups, C, 2*G*hd): per group [Wq^T_cols * scale | Wk^T_cols].
    wq_t = w_qkv[0:C].T * scale          # (C, C)
    wk_t = w_qkv[C:2 * C].T              # (C, C)
    slabs = []
    for g in range(num_groups):
        lo = g * group_size * hd
        hi = lo + group_size * hd
        slabs.append(jnp.concatenate([wq_t[:, lo:hi], wk_t[:, lo:hi]], axis=1))
    wqk = jnp.stack(slabs, axis=0).astype(compute_dtype)   # (num_groups, C, gw)
    x_c = x.astype(compute_dtype)

    kernel = functools.partial(
        _attn_weights_kernel, group_size=group_size, head_dim=hd)

    flops = B * (2 * N * C * (2 * C) + num_heads * 2 * N * N * hd)
    transcendentals = B * num_heads * N * N
    bytes_accessed = (x_c.size * x_c.dtype.itemsize
                      + wqk.size * wqk.dtype.itemsize
                      + B * num_heads * N * N * out_dtype.itemsize)

    out = pl.pallas_call(
        kernel,
        out_shape=jax.ShapeDtypeStruct((B, num_heads, N, N), out_dtype),
        grid_spec=pltpu.PrefetchScalarGridSpec(
            num_scalar_prefetch=0,
            grid=(B, num_groups),
            in_specs=[
                # x stays resident across the (inner) head-group axis.
                pl.BlockSpec((1, N, C), lambda b, g: (b, 0, 0)),
                # Per-group weight slab; block dims equal full array dims.
                pl.BlockSpec((1, C, gw), lambda b, g: (g, 0, 0)),
            ],
            # Direct (B, H, N, N) layout: lane-dense (N, N) stores per head.
            out_specs=pl.BlockSpec((1, group_size, N, N),
                                   lambda b, g: (b, g, 0, 0)),
            scratch_shapes=[pltpu.VMEM((N, gw), compute_dtype)],
        ),
        compiler_params=pltpu.CompilerParams(
            # Both axes independent -> megacore sharding on v7x's 2 TCs.
            dimension_semantics=("parallel", "parallel"),
            # Above v5e's 16 MiB default scoped limit; headroom on v7x (64 MiB).
            vmem_limit_bytes=48 * 1024 * 1024,
        ),
        cost_estimate=pl.CostEstimate(
            flops=flops,
            transcendentals=transcendentals,
            bytes_accessed=bytes_accessed),
    )(x_c, wqk)
    return out


def _reference(x, w_qkv, num_heads):
    """Pure-JAX replica of the PyTorch forward, for verification."""
    B, N, C = x.shape
    hd = C // num_heads
    scale = hd ** (-0.5)
    qkv = x @ w_qkv.T                                            # (B, N, 3C)
    qkv = qkv.reshape(B, N, 3, num_heads, hd).transpose(2, 0, 3, 1, 4)
    q, k = qkv[0], qkv[1]                                        # (B, H, N, hd)
    attn = jnp.einsum("bhnd,bhmd->bhnm", q, k) * scale
    return jax.nn.softmax(attn, axis=-1)


if __name__ == "__main__":
    B, N, dim, num_heads = 2, 8, 32, 8

    key = jax.random.PRNGKey(0)
    kx, kw = jax.random.split(key)
    x = jax.random.normal(kx, (B, N, dim), dtype=jnp.float32)
    # Deterministic synthetic qkv weight (nn.Linear(dim, 3*dim, bias=False) shape).
    w_qkv = jax.random.normal(kw, (3 * dim, dim), dtype=jnp.float32) * 0.1

    ref = _reference(x, w_qkv, num_heads)

    # f32 path, auto group size (single head group at this small shape).
    attn = get_attention_weights(x, w_qkv, num_heads)
    attn = jax.block_until_ready(attn)
    assert attn.shape == (B, num_heads, N, N)
    assert jnp.allclose(attn, ref, atol=5e-3, rtol=1e-2)

    # Multi-group path (head-group grid axis exercised), still f32.
    attn_g = get_attention_weights(x, w_qkv, num_heads, group_size=2)
    attn_g = jax.block_until_ready(attn_g)
    assert attn_g.shape == (B, num_heads, N, N)
    assert jnp.allclose(attn_g, ref, atol=5e-3, rtol=1e-2)

    # bf16 MXU-operand path (recommended on v5e/v6e/v7x); softmax stays f32.
    attn_bf16 = get_attention_weights(
        x, w_qkv, num_heads, compute_dtype=jnp.bfloat16)
    attn_bf16 = jax.block_until_ready(attn_bf16)
    assert attn_bf16.shape == (B, num_heads, N, N)
    assert jnp.allclose(attn_bf16, ref, atol=5e-2)

    print("KERNEL_OK")
</pallas_src>

<mosaic_0001>
module attributes {stable_mosaic.version = 11 : i64} {
  func.func @_attn_weights_kernel(%arg0: i32, %arg1: i32, %arg2: memref<1x8x32xf32, #tpu.memory_space<vmem>>, %arg3: memref<1x32x64xf32, #tpu.memory_space<vmem>>, %arg4: memref<1x8x8x8xf32, #tpu.memory_space<vmem>>, %arg5: memref<8x64xf32, #tpu.memory_space<vmem>>) attributes {dimension_semantics = [#tpu.dimension_semantics<parallel>, #tpu.dimension_semantics<parallel>], iteration_bounds = array<i64: 2, 1>, scalar_prefetch = 0 : i64, scratch_operands = 1 : i64, tpu.core_type = #tpu.core_type<tc>, window_params = [{transform_indices = @transform_0, window_bounds = array<i64: 1, 8, 32>}, {transform_indices = @transform_1, window_bounds = array<i64: 1, 32, 64>}, {transform_indices = @transform_2, window_bounds = array<i64: 1, 8, 8, 8>}]} {
    %c0 = arith.constant 0 : index
    %c0_0 = arith.constant 0 : index
    %c0_1 = arith.constant 0 : index
    %0 = vector.load %arg2[%c0, %c0_0, %c0_1] : memref<1x8x32xf32, #tpu.memory_space<vmem>>, vector<1x8x32xf32>
    %1 = vector.shape_cast %0 : vector<1x8x32xf32> to vector<8x32xf32>
    %c0_2 = arith.constant 0 : index
    %c0_3 = arith.constant 0 : index
    %c0_4 = arith.constant 0 : index
    %2 = vector.load %arg3[%c0_2, %c0_3, %c0_4] : memref<1x32x64xf32, #tpu.memory_space<vmem>>, vector<1x32x64xf32>
    %3 = vector.shape_cast %2 : vector<1x32x64xf32> to vector<32x64xf32>
    %cst = arith.constant dense<0.000000e+00> : vector<8x64xf32>
    %4 = tpu.matmul %1, %3, %cst {dimension_numbers = #tpu.dot_dimension_numbers<[1], [0], [0], [1], [0, 0, 1, 1], [], []>} : vector<8x32xf32>, vector<32x64xf32>, vector<8x64xf32> -> vector<8x64xf32>
    %c0_5 = arith.constant 0 : index
    %c0_6 = arith.constant 0 : index
    %5 = vector.load %arg5[%c0_5, %c0_6] : memref<8x64xf32, #tpu.memory_space<vmem>>, vector<8x64xf32>
    tpu.vector_store %arg5[%c0_5, %c0_6], %4 {strides = array<i32>} : memref<8x64xf32, #tpu.memory_space<vmem>>, vector<8x64xf32>,
    %c0_7 = arith.constant 0 : index
    %c0_8 = arith.constant 0 : index
    %6 = vector.load %arg5[%c0_7, %c0_8] : memref<8x64xf32, #tpu.memory_space<vmem>>, vector<8x4xf32>
    %c0_9 = arith.constant 0 : index
    %c32 = arith.constant 32 : index
    %7 = vector.load %arg5[%c0_9, %c32] : memref<8x64xf32, #tpu.memory_space<vmem>>, vector<8x4xf32>
    %cst_10 = arith.constant dense<0.000000e+00> : vector<8x8xf32>
    %8 = tpu.matmul %6, %7, %cst_10 {dimension_numbers = #tpu.dot_dimension_numbers<[1], [1], [0], [0], [0, 0, 1, 0], [], []>} : vector<8x4xf32>, vector<8x4xf32>, vector<8x8xf32> -> vector<8x8xf32>
    %cst_11 = arith.constant dense<0xFF800000> : vector<8xf32>
    %9 = vector.multi_reduction <maximumf>, %8, %cst_11 [1] : vector<8x8xf32> to vector<8xf32>
    %10 = vector.shape_cast %9 : vector<8xf32> to vector<8x1xf32>
    %11 = vector.broadcast %10 : vector<8x1xf32> to vector<8x8xf32>
    %12 = arith.subf %8, %11 : vector<8x8xf32>
    %13 = math.exp %12 : vector<8x8xf32>
    %cst_12 = arith.constant dense<0.000000e+00> : vector<8xf32>
    %14 = vector.multi_reduction <add>, %13, %cst_12 [1] : vector<8x8xf32> to vector<8xf32>
    %15 = vector.shape_cast %14 : vector<8xf32> to vector<8x1xf32>
    %16 = tpu.reciprocal %15 {approx = true} : vector<8x1xf32> -> vector<8x1xf32>
    %17 = vector.broadcast %16 : vector<8x1xf32> to vector<8x8xf32>
    %18 = arith.mulf %13, %17 : vector<8x8xf32>
    %c0_13 = arith.constant 0 : index
    %c0_14 = arith.constant 0 : index
    %c0_15 = arith.constant 0 : index
    %c0_16 = arith.constant 0 : index
    %19 = vector.load %arg4[%c0_13, %c0_14, %c0_15, %c0_16] : memref<1x8x8x8xf32, #tpu.memory_space<vmem>>, vector<1x1x8x8xf32>
    %20 = vector.shape_cast %19 : vector<1x1x8x8xf32> to vector<8x8xf32>
    %21 = vector.shape_cast %18 : vector<8x8xf32> to vector<1x1x8x8xf32>
    tpu.vector_store %arg4[%c0_13, %c0_14, %c0_15, %c0_16], %21 {strides = array<i32>} : memref<1x8x8x8xf32, #tpu.memory_space<vmem>>, vector<1x1x8x8xf32>,
    %c0_17 = arith.constant 0 : index
    %c4 = arith.constant 4 : index
    %22 = vector.load %arg5[%c0_17, %c4] : memref<8x64xf32, #tpu.memory_space<vmem>>, vector<8x4xf32>
    %c0_18 = arith.constant 0 : index
    %c36 = arith.constant 36 : index
    %23 = vector.load %arg5[%c0_18, %c36] : memref<8x64xf32, #tpu.memory_space<vmem>>, vector<8x4xf32>
    %cst_19 = arith.constant dense<0.000000e+00> : vector<8x8xf32>
    %24 = tpu.matmul %22, %23, %cst_19 {dimension_numbers = #tpu.dot_dimension_numbers<[1], [1], [0], [0], [0, 0, 1, 0], [], []>} : vector<8x4xf32>, vector<8x4xf32>, vector<8x8xf32> -> vector<8x8xf32>
    %cst_20 = arith.constant dense<0xFF800000> : vector<8xf32>
    %25 = vector.multi_reduction <maximumf>, %24, %cst_20 [1] : vector<8x8xf32> to vector<8xf32>
    %26 = vector.shape_cast %25 : vector<8xf32> to vector<8x1xf32>
    %27 = vector.broadcast %26 : vector<8x1xf32> to vector<8x8xf32>
    %28 = arith.subf %24, %27 : vector<8x8xf32>
    %29 = math.exp %28 : vector<8x8xf32>
    %cst_21 = arith.constant dense<0.000000e+00> : vector<8xf32>
    %30 = vector.multi_reduction <add>, %29, %cst_21 [1] : vector<8x8xf32> to vector<8xf32>
    %31 = vector.shape_cast %30 : vector<8xf32> to vector<8x1xf32>
    %32 = tpu.reciprocal %31 {approx = true} : vector<8x1xf32> -> vector<8x1xf32>
    %33 = vector.broadcast %32 : vector<8x1xf32> to vector<8x8xf32>
    %34 = arith.mulf %29, %33 : vector<8x8xf32>
    %c0_22 = arith.constant 0 : index
    %c1 = arith.constant 1 : index
    %c0_23 = arith.constant 0 : index
    %c0_24 = arith.constant 0 : index
    %35 = vector.load %arg4[%c0_22, %c1, %c0_23, %c0_24] : memref<1x8x8x8xf32, #tpu.memory_space<vmem>>, vector<1x1x8x8xf32>
    %36 = vector.shape_cast %35 : vector<1x1x8x8xf32> to vector<8x8xf32>
    %37 = vector.shape_cast %34 : vector<8x8xf32> to vector<1x1x8x8xf32>
    tpu.vector_store %arg4[%c0_22, %c1, %c0_23, %c0_24], %37 {strides = array<i32>} : memref<1x8x8x8xf32, #tpu.memory_space<vmem>>, vector<1x1x8x8xf32>,
    %c0_25 = arith.constant 0 : index
    %c8 = arith.constant 8 : index
    %38 = vector.load %arg5[%c0_25, %c8] : memref<8x64xf32, #tpu.memory_space<vmem>>, vector<8x4xf32>
    %c0_26 = arith.constant 0 : index
    %c40 = arith.constant 40 : index
    %39 = vector.load %arg5[%c0_26, %c40] : memref<8x64xf32, #tpu.memory_space<vmem>>, vector<8x4xf32>
    %cst_27 = arith.constant dense<0.000000e+00> : vector<8x8xf32>
    %40 = tpu.matmul %38, %39, %cst_27 {dimension_numbers = #tpu.dot_dimension_numbers<[1], [1], [0], [0], [0, 0, 1, 0], [], []>} : vector<8x4xf32>, vector<8x4xf32>, vector<8x8xf32> -> vector<8x8xf32>
    %cst_28 = arith.constant dense<0xFF800000> : vector<8xf32>
    %41 = vector.multi_reduction <maximumf>, %40, %cst_28 [1] : vector<8x8xf32> to vector<8xf32>
    %42 = vector.shape_cast %41 : vector<8xf32> to vector<8x1xf32>
    %43 = vector.broadcast %42 : vector<8x1xf32> to vector<8x8xf32>
    %44 = arith.subf %40, %43 : vector<8x8xf32>
    %45 = math.exp %44 : vector<8x8xf32>
    %cst_29 = arith.constant dense<0.000000e+00> : vector<8xf32>
    %46 = vector.multi_reduction <add>, %45, %cst_29 [1] : vector<8x8xf32> to vector<8xf32>
    %47 = vector.shape_cast %46 : vector<8xf32> to vector<8x1xf32>
    %48 = tpu.reciprocal %47 {approx = true} : vector<8x1xf32> -> vector<8x1xf32>
    %49 = vector.broadcast %48 : vector<8x1xf32> to vector<8x8xf32>
    %50 = arith.mulf %45, %49 : vector<8x8xf32>
    %c0_30 = arith.constant 0 : index
    %c2 = arith.constant 2 : index
    %c0_31 = arith.constant 0 : index
    %c0_32 = arith.constant 0 : index
    %51 = vector.load %arg4[%c0_30, %c2, %c0_31, %c0_32] : memref<1x8x8x8xf32, #tpu.memory_space<vmem>>, vector<1x1x8x8xf32>
    %52 = vector.shape_cast %51 : vector<1x1x8x8xf32> to vector<8x8xf32>
    %53 = vector.shape_cast %50 : vector<8x8xf32> to vector<1x1x8x8xf32>
    tpu.vector_store %arg4[%c0_30, %c2, %c0_31, %c0_32], %53 {strides = array<i32>} : memref<1x8x8x8xf32, #tpu.memory_space<vmem>>, vector<1x1x8x8xf32>,
    %c0_33 = arith.constant 0 : index
    %c12 = arith.constant 12 : index
    %54 = vector.load %arg5[%c0_33, %c12] : memref<8x64xf32, #tpu.memory_space<vmem>>, vector<8x4xf32>
    %c0_34 = arith.constant 0 : index
    %c44 = arith.constant 44 : index
    %55 = vector.load %arg5[%c0_34, %c44] : memref<8x64xf32, #tpu.memory_space<vmem>>, vector<8x4xf32>
    %cst_35 = arith.constant dense<0.000000e+00> : vector<8x8xf32>
    %56 = tpu.matmul %54, %55, %cst_35 {dimension_numbers = #tpu.dot_dimension_numbers<[1], [1], [0], [0], [0, 0, 1, 0], [], []>} : vector<8x4xf32>, vector<8x4xf32>, vector<8x8xf32> -> vector<8x8xf32>
    %cst_36 = arith.constant dense<0xFF800000> : vector<8xf32>
    %57 = vector.multi_reduction <maximumf>, %56, %cst_36 [1] : vector<8x8xf32> to vector<8xf32>
    %58 = vector.shape_cast %57 : vector<8xf32> to vector<8x1xf32>
    %59 = vector.broadcast %58 : vector<8x1xf32> to vector<8x8xf32>
    %60 = arith.subf %56, %59 : vector<8x8xf32>
    %61 = math.exp %60 : vector<8x8xf32>
    %cst_37 = arith.constant dense<0.000000e+00> : vector<8xf32>
    %62 = vector.multi_reduction <add>, %61, %cst_37 [1] : vector<8x8xf32> to vector<8xf32>
    %63 = vector.shape_cast %62 : vector<8xf32> to vector<8x1xf32>
    %64 = tpu.reciprocal %63 {approx = true} : vector<8x1xf32> -> vector<8x1xf32>
    %65 = vector.broadcast %64 : vector<8x1xf32> to vector<8x8xf32>
    %66 = arith.mulf %61, %65 : vector<8x8xf32>
    %c0_38 = arith.constant 0 : index
    %c3 = arith.constant 3 : index
    %c0_39 = arith.constant 0 : index
    %c0_40 = arith.constant 0 : index
    %67 = vector.load %arg4[%c0_38, %c3, %c0_39, %c0_40] : memref<1x8x8x8xf32, #tpu.memory_space<vmem>>, vector<1x1x8x8xf32>
    %68 = vector.shape_cast %67 : vector<1x1x8x8xf32> to vector<8x8xf32>
    %69 = vector.shape_cast %66 : vector<8x8xf32> to vector<1x1x8x8xf32>
    tpu.vector_store %arg4[%c0_38, %c3, %c0_39, %c0_40], %69 {strides = array<i32>} : memref<1x8x8x8xf32, #tpu.memory_space<vmem>>, vector<1x1x8x8xf32>,
    %c0_41 = arith.constant 0 : index
    %c16 = arith.constant 16 : index
    %70 = vector.load %arg5[%c0_41, %c16] : memref<8x64xf32, #tpu.memory_space<vmem>>, vector<8x4xf32>
    %c0_42 = arith.constant 0 : index
    %c48 = arith.constant 48 : index
    %71 = vector.load %arg5[%c0_42, %c48] : memref<8x64xf32, #tpu.memory_space<vmem>>, vector<8x4xf32>
    %cst_43 = arith.constant dense<0.000000e+00> : vector<8x8xf32>
    %72 = tpu.matmul %70, %71, %cst_43 {dimension_numbers = #tpu.dot_dimension_numbers<[1], [1], [0], [0], [0, 0, 1, 0], [], []>} : vector<8x4xf32>, vector<8x4xf32>, vector<8x8xf32> -> vector<8x8xf32>
    %cst_44 = arith.constant dense<0xFF800000> : vector<8xf32>
    %73 = vector.multi_reduction <maximumf>, %72, %cst_44 [1] : vector<8x8xf32> to vector<8xf32>
    %74 = vector.shape_cast %73 : vector<8xf32> to vector<8x1xf32>
    %75 = vector.broadcast %74 : vector<8x1xf32> to vector<8x8xf32>
    %76 = arith.subf %72, %75 : vector<8x8xf32>
    %77 = math.exp %76 : vector<8x8xf32>
    %cst_45 = arith.constant dense<0.000000e+00> : vector<8xf32>
    %78 = vector.multi_reduction <add>, %77, %cst_45 [1] : vector<8x8xf32> to vector<8xf32>
    %79 = vector.shape_cast %78 : vector<8xf32> to vector<8x1xf32>
    %80 = tpu.reciprocal %79 {approx = true} : vector<8x1xf32> -> vector<8x1xf32>
    %81 = vector.broadcast %80 : vector<8x1xf32> to vector<8x8xf32>
    %82 = arith.mulf %77, %81 : vector<8x8xf32>
    %c0_46 = arith.constant 0 : index
    %c4_47 = arith.constant 4 : index
    %c0_48 = arith.constant 0 : index
    %c0_49 = arith.constant 0 : index
    %83 = vector.load %arg4[%c0_46, %c4_47, %c0_48, %c0_49] : memref<1x8x8x8xf32, #tpu.memory_space<vmem>>, vector<1x1x8x8xf32>
    %84 = vector.shape_cast %83 : vector<1x1x8x8xf32> to vector<8x8xf32>
    %85 = vector.shape_cast %82 : vector<8x8xf32> to vector<1x1x8x8xf32>
    tpu.vector_store %arg4[%c0_46, %c4_47, %c0_48, %c0_49], %85 {strides = array<i32>} : memref<1x8x8x8xf32, #tpu.memory_space<vmem>>, vector<1x1x8x8xf32>,
    %c0_50 = arith.constant 0 : index
    %c20 = arith.constant 20 : index
    %86 = vector.load %arg5[%c0_50, %c20] : memref<8x64xf32, #tpu.memory_space<vmem>>, vector<8x4xf32>
    %c0_51 = arith.constant 0 : index
    %c52 = arith.constant 52 : index
    %87 = vector.load %arg5[%c0_51, %c52] : memref<8x64xf32, #tpu.memory_space<vmem>>, vector<8x4xf32>
    %cst_52 = arith.constant dense<0.000000e+00> : vector<8x8xf32>
    %88 = tpu.matmul %86, %87, %cst_52 {dimension_numbers = #tpu.dot_dimension_numbers<[1], [1], [0], [0], [0, 0, 1, 0], [], []>} : vector<8x4xf32>, vector<8x4xf32>, vector<8x8xf32> -> vector<8x8xf32>
    %cst_53 = arith.constant dense<0xFF800000> : vector<8xf32>
    %89 = vector.multi_reduction <maximumf>, %88, %cst_53 [1] : vector<8x8xf32> to vector<8xf32>
    %90 = vector.shape_cast %89 : vector<8xf32> to vector<8x1xf32>
    %91 = vector.broadcast %90 : vector<8x1xf32> to vector<8x8xf32>
    %92 = arith.subf %88, %91 : vector<8x8xf32>
    %93 = math.exp %92 : vector<8x8xf32>
    %cst_54 = arith.constant dense<0.000000e+00> : vector<8xf32>
    %94 = vector.multi_reduction <add>, %93, %cst_54 [1] : vector<8x8xf32> to vector<8xf32>
    %95 = vector.shape_cast %94 : vector<8xf32> to vector<8x1xf32>
    %96 = tpu.reciprocal %95 {approx = true} : vector<8x1xf32> -> vector<8x1xf32>
    %97 = vector.broadcast %96 : vector<8x1xf32> to vector<8x8xf32>
    %98 = arith.mulf %93, %97 : vector<8x8xf32>
    %c0_55 = arith.constant 0 : index
    %c5 = arith.constant 5 : index
    %c0_56 = arith.constant 0 : index
    %c0_57 = arith.constant 0 : index
    %99 = vector.load %arg4[%c0_55, %c5, %c0_56, %c0_57] : memref<1x8x8x8xf32, #tpu.memory_space<vmem>>, vector<1x1x8x8xf32>
    %100 = vector.shape_cast %99 : vector<1x1x8x8xf32> to vector<8x8xf32>
    %101 = vector.shape_cast %98 : vector<8x8xf32> to vector<1x1x8x8xf32>
    tpu.vector_store %arg4[%c0_55, %c5, %c0_56, %c0_57], %101 {strides = array<i32>} : memref<1x8x8x8xf32, #tpu.memory_space<vmem>>, vector<1x1x8x8xf32>,
    %c0_58 = arith.constant 0 : index
    %c24 = arith.constant 24 : index
    %102 = vector.load %arg5[%c0_58, %c24] : memref<8x64xf32, #tpu.memory_space<vmem>>, vector<8x4xf32>
    %c0_59 = arith.constant 0 : index
    %c56 = arith.constant 56 : index
    %103 = vector.load %arg5[%c0_59, %c56] : memref<8x64xf32, #tpu.memory_space<vmem>>, vector<8x4xf32>
    %cst_60 = arith.constant dense<0.000000e+00> : vector<8x8xf32>
    %104 = tpu.matmul %102, %103, %cst_60 {dimension_numbers = #tpu.dot_dimension_numbers<[1], [1], [0], [0], [0, 0, 1, 0], [], []>} : vector<8x4xf32>, vector<8x4xf32>, vector<8x8xf32> -> vector<8x8xf32>
    %cst_61 = arith.constant dense<0xFF800000> : vector<8xf32>
    %105 = vector.multi_reduction <maximumf>, %104, %cst_61 [1] : vector<8x8xf32> to vector<8xf32>
    %106 = vector.shape_cast %105 : vector<8xf32> to vector<8x1xf32>
    %107 = vector.broadcast %106 : vector<8x1xf32> to vector<8x8xf32>
    %108 = arith.subf %104, %107 : vector<8x8xf32>
    %109 = math.exp %108 : vector<8x8xf32>
    %cst_62 = arith.constant dense<0.000000e+00> : vector<8xf32>
    %110 = vector.multi_reduction <add>, %109, %cst_62 [1] : vector<8x8xf32> to vector<8xf32>
    %111 = vector.shape_cast %110 : vector<8xf32> to vector<8x1xf32>
    %112 = tpu.reciprocal %111 {approx = true} : vector<8x1xf32> -> vector<8x1xf32>
    %113 = vector.broadcast %112 : vector<8x1xf32> to vector<8x8xf32>
    %114 = arith.mulf %109, %113 : vector<8x8xf32>
    %c0_63 = arith.constant 0 : index
    %c6 = arith.constant 6 : index
    %c0_64 = arith.constant 0 : index
    %c0_65 = arith.constant 0 : index
    %115 = vector.load %arg4[%c0_63, %c6, %c0_64, %c0_65] : memref<1x8x8x8xf32, #tpu.memory_space<vmem>>, vector<1x1x8x8xf32>
    %116 = vector.shape_cast %115 : vector<1x1x8x8xf32> to vector<8x8xf32>
    %117 = vector.shape_cast %114 : vector<8x8xf32> to vector<1x1x8x8xf32>
    tpu.vector_store %arg4[%c0_63, %c6, %c0_64, %c0_65], %117 {strides = array<i32>} : memref<1x8x8x8xf32, #tpu.memory_space<vmem>>, vector<1x1x8x8xf32>,
    %c0_66 = arith.constant 0 : index
    %c28 = arith.constant 28 : index
    %118 = vector.load %arg5[%c0_66, %c28] : memref<8x64xf32, #tpu.memory_space<vmem>>, vector<8x4xf32>
    %c0_67 = arith.constant 0 : index
    %c60 = arith.constant 60 : index
    %119 = vector.load %arg5[%c0_67, %c60] : memref<8x64xf32, #tpu.memory_space<vmem>>, vector<8x4xf32>
    %cst_68 = arith.constant dense<0.000000e+00> : vector<8x8xf32>
    %120 = tpu.matmul %118, %119, %cst_68 {dimension_numbers = #tpu.dot_dimension_numbers<[1], [1], [0], [0], [0, 0, 1, 0], [], []>} : vector<8x4xf32>, vector<8x4xf32>, vector<8x8xf32> -> vector<8x8xf32>
    %cst_69 = arith.constant dense<0xFF800000> : vector<8xf32>
    %121 = vector.multi_reduction <maximumf>, %120, %cst_69 [1] : vector<8x8xf32> to vector<8xf32>
    %122 = vector.shape_cast %121 : vector<8xf32> to vector<8x1xf32>
    %123 = vector.broadcast %122 : vector<8x1xf32> to vector<8x8xf32>
    %124 = arith.subf %120, %123 : vector<8x8xf32>
    %125 = math.exp %124 : vector<8x8xf32>
    %cst_70 = arith.constant dense<0.000000e+00> : vector<8xf32>
    %126 = vector.multi_reduction <add>, %125, %cst_70 [1] : vector<8x8xf32> to vector<8xf32>
    %127 = vector.shape_cast %126 : vector<8xf32> to vector<8x1xf32>
    %128 = tpu.reciprocal %127 {approx = true} : vector<8x1xf32> -> vector<8x1xf32>
    %129 = vector.broadcast %128 : vector<8x1xf32> to vector<8x8xf32>
    %130 = arith.mulf %125, %129 : vector<8x8xf32>
    %c0_71 = arith.constant 0 : index
    %c7 = arith.constant 7 : index
    %c0_72 = arith.constant 0 : index
    %c0_73 = arith.constant 0 : index
    %131 = vector.load %arg4[%c0_71, %c7, %c0_72, %c0_73] : memref<1x8x8x8xf32, #tpu.memory_space<vmem>>, vector<1x1x8x8xf32>
    %132 = vector.shape_cast %131 : vector<1x1x8x8xf32> to vector<8x8xf32>
    %133 = vector.shape_cast %130 : vector<8x8xf32> to vector<1x1x8x8xf32>
    tpu.vector_store %arg4[%c0_71, %c7, %c0_72, %c0_73], %133 {strides = array<i32>} : memref<1x8x8x8xf32, #tpu.memory_space<vmem>>, vector<1x1x8x8xf32>,
    return
  }
  func.func @transform_0(%arg0: i32, %arg1: i32) -> (i32, i32, i32) {
    %c0_i32 = arith.constant 0 : i32
    %c0_i32_0 = arith.constant 0 : i32
    %c0_i32_1 = arith.constant 0 : i32
    return %arg0, %c0_i32, %c0_i32_0 : i32, i32, i32
  }
  func.func @transform_1(%arg0: i32, %arg1: i32) -> (i32, i32, i32) {
    %c0_i32 = arith.constant 0 : i32
    %c0_i32_0 = arith.constant 0 : i32
    %c0_i32_1 = arith.constant 0 : i32
    return %arg1, %c0_i32, %c0_i32_0 : i32, i32, i32
  }
  func.func @transform_2(%arg0: i32, %arg1: i32) -> (i32, i32, i32, i32) {
    %c0_i32 = arith.constant 0 : i32
    %c0_i32_0 = arith.constant 0 : i32
    %c0_i32_1 = arith.constant 0 : i32
    return %arg0, %arg1, %c0_i32, %c0_i32_0 : i32, i32, i32, i32
  }
}

</mosaic_0001>

<llo_original>
// kernel: tpu_custom_call.1
$region0: #{tpu_custom_call.1}
  #allocation0 [shape = 'u32[]', space=smem, size = 0x4, offset = 0x4, fixed_abs, tag = 'smem constant byte address 0x4 - core index']
  #allocation1 [shape = 'u32[144,128]{1,0:T(1,128)}', space=vmem, size = 0x12000, scoped, tag = 'internal scratch']
  #allocation2 [shape = 'f32[8,64]{1,0:T(8,128)}', space=vmem, size = 0x1000, scoped, tag = 'scratch operand']
  %s0 = inlined_call_operand.hbm [shape: f32[2,8,32], index: 0, kind: input, shape index: {}]
  %s1 = inlined_call_operand.hbm [shape: f32[1,32,64], index: 1, kind: input, shape index: {}]
  %s2 = inlined_call_operand.hbm [shape: f32[2,8,8,8], index: 2, kind: output, shape index: {}]
  %s3 = sld [smem:[#allocation0]]
  $region49: #{tpu_custom_call.1} parent=0
    _
  %s5 = ssub.s32 1, %s3
  %s6 = scalar_select 0, %s5, %s3
  $region1: #{tpu_custom_call.1} parent=0
    #allocation3 [shape = 'u8[8192]{0}', space=vmem, size = 0x2000, scoped, tag = 'input window, operand 0']
    #allocation4 [shape = 's32[2]{0}', space=sflag, size = 0x8, scoped, tag = 'scoped memory for tpu_custom_call.1']
    #allocation5 [shape = 's32[2]{0}', space=sflag, size = 0x8, scoped, tag = 'scoped memory for tpu_custom_call.1']
    #allocation6 [shape = 'u8[16384]{0}', space=vmem, size = 0x4000, scoped, tag = 'input window, operand 1, single buffered']
    #allocation7 [shape = 's32[1]{0}', space=sflag, size = 0x4, scoped, tag = 'scoped memory for tpu_custom_call.1']
    #allocation8 [shape = 'u8[65536]{0}', space=vmem, size = 0x10000, scoped, tag = 'output window, operand 0']
    %7 = vsyncpa [#allocation4], 0
    %s8 = scalar_lea.sflag [#allocation4], 1
    %9 = vsyncpa %s8, 0
    %10 = vsyncpa [#allocation7], 0
    %11 = vsyncpa [#allocation5], 0
    %s12 = scalar_lea.sflag [#allocation5], 1
    %13 = vsyncpa %s12, 0
    loop: start=0, step=1, limit=4
    $region2: #{tpu_custom_call.1} parent=1 // loop_pre_header
      _
    $region3: #{tpu_custom_call.1} parent=1 // loop_header
      %s15 = sphi 0, %s19
      %p16 = scmp.ge.s32.totalorder %s15, 4
      %s22 = sphi 0, %s34
      %s23 = sphi 0, %s30
      %s24 = sphi 0, %s22
      %s25 = sphi 0, %s23
      %s26 = sphi 0, %s24
      %s27 = sphi 0, %s25
      %s37 = sphi 0, %s39
      %s40 = sphi 0, %s37
      %s41 = sphi 0, %s40
      %s57 = sphi 0, %s41
      %s63 = sphi 0, %s65
      %s66 = sphi 0, %s63
      %s67 = sphi 0, %s66
      %s83 = sphi 0, %s67
      %s91 = sphi 0, %s93
      %s94 = sphi 0, %s91
      %s95 = sphi 0, %s94
      %s111 = sphi 0, %s95
    $region4: #{tpu_custom_call.1} parent=1 // loop_header_branch
      %18 = sbr.rel (%p16) target = $region8
    $region5: #{tpu_custom_call.1} parent=1 // loop_body
      %s20 = ssub.s32 %s15, 1
      %s21 = ssub.s32 %s15, 2
      %s28 = sadd.s32 1, %s23
      %p29 = scmp.ge.s32.totalorder %s28, 1
      %s30 = scalar_select %p29, 0, %s28
      %s31 = sadd.s32 1, %s22
      %s32 = scalar_select %p29, %s31, %s22
      %p33 = scmp.ge.s32.totalorder %s32, 2
      %s34 = scalar_select %p33, 0, %s32
      %s35 = ssub.s32 %s22, %s34
      %p36 = scmp.eq.s32.totalorder %s35, 0
      %s38 = sadd.s32 %s37, 1
      %s39 = scalar_select %p36, %s37, %s38
      %p42 = pneg %p36
      %p43 = scmp.eq.s32.totalorder %s15, 1
      %p44 = por %p42, %p43
      %p45 = scmp.ne.s32.totalorder %s37, %s40
      %p46 = scmp.eq.s32.totalorder %s15, 0
      %p47 = por %p45, %p46
      %p48 = scmp.ne.s32.totalorder %s37, %s40
      %p49 = scmp.eq.s32.totalorder %s20, 1
      %p50 = por %p48, %p49
      %p51 = scmp.ne.s32.totalorder %s40, %s41
      %p52 = scmp.eq.s32.totalorder %s20, 0
      %p53 = por %p51, %p52
      %p54 = scmp.ne.s32.totalorder %s40, %s41
      %p55 = scmp.eq.s32.totalorder %s21, 1
      %p56 = por %p54, %p55
      %p58 = scmp.ne.s32.totalorder %s41, %s57
      %p59 = scmp.eq.s32.totalorder %s21, 0
      %p60 = por %p58, %p59
      %s61 = ssub.s32 %s23, %s30
      %p62 = scmp.eq.s32.totalorder %s61, 0
      %s64 = sadd.s32 %s63, 1
      %s65 = scalar_select %p62, %s63, %s64
      %p68 = pneg %p62
      %p69 = scmp.eq.s32.totalorder %s15, 1
      %p70 = por %p68, %p69
      %p71 = scmp.ne.s32.totalorder %s63, %s66
      %p72 = scmp.eq.s32.totalorder %s15, 0
      %p73 = por %p71, %p72
      %p74 = scmp.ne.s32.totalorder %s63, %s66
      %p75 = scmp.eq.s32.totalorder %s20, 1
      %p76 = por %p74, %p75
      %p77 = scmp.ne.s32.totalorder %s66, %s67
      %p78 = scmp.eq.s32.totalorder %s20, 0
      %p79 = por %p77, %p78
      %p80 = scmp.ne.s32.totalorder %s66, %s67
      %p81 = scmp.eq.s32.totalorder %s21, 1
      %p82 = por %p80, %p81
      %p84 = scmp.ne.s32.totalorder %s67, %s83
      %p85 = scmp.eq.s32.totalorder %s21, 0
      %p86 = por %p84, %p85
      %s87 = ssub.s32 %s22, %s34
      %s88 = ssub.s32 %s23, %s30
      %s89 = sor.u32 %s87, %s88
      %p90 = scmp.eq.s32.totalorder %s89, 0
      %s92 = sadd.s32 %s91, 1
      %s93 = scalar_select %p90, %s91, %s92
      %p96 = pneg %p90
      %p97 = scmp.eq.s32.totalorder %s15, 1
      %p98 = por %p96, %p97
      %p99 = scmp.ne.s32.totalorder %s91, %s94
      %p100 = scmp.eq.s32.totalorder %s15, 0
      %p101 = por %p99, %p100
      %p102 = scmp.ne.s32.totalorder %s91, %s94
      %p103 = scmp.eq.s32.totalorder %s20, 1
      %p104 = por %p102, %p103
      %p105 = scmp.ne.s32.totalorder %s94, %s95
      %p106 = scmp.eq.s32.totalorder %s20, 0
      %p107 = por %p105, %p106
      %p108 = scmp.ne.s32.totalorder %s94, %s95
      %p109 = scmp.eq.s32.totalorder %s21, 1
      %p110 = por %p108, %p109
      %p112 = scmp.ne.s32.totalorder %s95, %s111
      %p113 = scmp.eq.s32.totalorder %s21, 0
      %p114 = por %p112, %p113
      %p115 = scmp.le.s32.totalorder 1, %s15
      %p116 = scmp.lt.s32.totalorder %s15, 3
      %p117 = pnand %p115, %p116
      %p118 = pneg %p117
      // Predicated region
      $region9: #{tpu_custom_call.1} parent=5 // pred_check
        _
      $region10: #{tpu_custom_call.1} parent=5 // pred_check_branch
        %120 = sbr.rel (%p117) target = $region12
      $region11: #{tpu_custom_call.1} parent=5 // pred_region
        %s121 = ssub.s32 %s15, 1
        // Predicated region
        $region13: #{tpu_custom_call.1} parent=11 // pred_check
          %p122 = pneg %p79
        $region14: #{tpu_custom_call.1} parent=11 // pred_check_branch
          %124 = sbr.rel (%p122) target = $region16
        $region15: #{tpu_custom_call.1} parent=11 // pred_region
          %s126 = ssub.s32 512, 512
          %127 = vsyncadd [#allocation7], %s126
          %s128 = smul.addr %s25, 4
          %s129 = smul.addr %s128, 128
          %s130 = scalar_lea.hbm %s1, %s129
          %s131 = sshll.u32 [#allocation6], 4
          %s132 = int_to_ptr.vmem [resolvable:$true] %s131
          %137 = dma.hbm_to_vmem [thread:$0]  %s130, 512, %s132, [#allocation7], 128, 128, 8
        $region16: #{tpu_custom_call.1} parent=11 // pred_fallthru
          _
      $region12: #{tpu_custom_call.1} parent=5 // pred_fallthru
        _
      %p138 = scmp.lt.s32.totalorder %s15, 2
      // Predicated region
      $region17: #{tpu_custom_call.1} parent=5 // pred_check
        %p139 = pneg %p138
      $region18: #{tpu_custom_call.1} parent=5 // pred_check_branch
        %141 = sbr.rel (%p139) target = $region20
      $region19: #{tpu_custom_call.1} parent=5 // pred_region
        // Predicated region
        $region21: #{tpu_custom_call.1} parent=19 // pred_check
          %p142 = pneg %p47
        $region22: #{tpu_custom_call.1} parent=19 // pred_check_branch
          %144 = sbr.rel (%p142) target = $region24
        $region23: #{tpu_custom_call.1} parent=19 // pred_region
          %s145 = sand.u32 %s37, 1
          %s146 = scalar_lea.sflag [#allocation4], %s145
          %s147 = sand.u32 %s37, 1
          %s148 = smul.addr %s147, 8
          %s149 = scalar_lea.vmem [#allocation3], %s148
          %s151 = ssub.s32 128, 128
          %152 = vsyncadd %s146, %s151
          %s153 = smul.addr %s22, 128
          %s154 = scalar_lea.hbm %s0, %s153
          %s156 = sshll.u32 %s149, 4
          %s157 = int_to_ptr.vmem [resolvable:$true] %s156
          %159 = dma.hbm_to_vmem [thread:$0]  %s154, 128, %s157, %s146
        $region24: #{tpu_custom_call.1} parent=19 // pred_fallthru
          _
      $region20: #{tpu_custom_call.1} parent=5 // pred_fallthru
        _
      %p160 = scmp.le.s32.totalorder 1, %s15
      %p161 = scmp.lt.s32.totalorder %s15, 3
      %p162 = pnand %p160, %p161
      %p163 = pneg %p162
      // Predicated region
      $region25: #{tpu_custom_call.1} parent=5 // pred_check
        _
      $region26: #{tpu_custom_call.1} parent=5 // pred_check_branch
        %165 = sbr.rel (%p162) target = $region28
      $region27: #{tpu_custom_call.1} parent=5 // pred_region
        %s166 = ssub.s32 %s15, 1
        %s167 = sand.u32 %s40, 1
        %s168 = scalar_lea.sflag [#allocation4], %s167
        %s169 = sand.u32 %s40, 1
        %s170 = smul.addr %s169, 8
        %s171 = scalar_lea.vmem [#allocation3], %s170
        // Predicated region
        $region29: #{tpu_custom_call.1} parent=27 // pred_check
          %p172 = pneg %p53
        $region30: #{tpu_custom_call.1} parent=27 // pred_check_branch
          %174 = sbr.rel (%p172) target = $region32
        $region31: #{tpu_custom_call.1} parent=27 // pred_region
          %175 = dma.done %s168, 128
        $region32: #{tpu_custom_call.1} parent=27 // pred_fallthru
          _
        // Predicated region
        $region33: #{tpu_custom_call.1} parent=27 // pred_check
          %p176 = pneg %p79
        $region34: #{tpu_custom_call.1} parent=27 // pred_check_branch
          %178 = sbr.rel (%p176) target = $region36
        $region35: #{tpu_custom_call.1} parent=27 // pred_region
          %179 = dma.done [#allocation7], 512
        $region36: #{tpu_custom_call.1} parent=27 // pred_fallthru
          _
        %s180 = sand.u32 %s40, 1
        %s181 = scalar_lea.sflag [#allocation4], %s180
        %s182 = sand.u32 %s40, 1
        %s183 = smul.addr %s182, 8
        %s184 = scalar_lea.vmem [#allocation3], %s183
        %p185 = pneg %p53
        %p186 = pneg %p50
        %p187 = pneg %p79
        %p188 = pneg %p76
        %p189 = pneg %p107
        %p190 = pneg %p104
        %s191 = sand.u32 %s94, 1
        %s192 = scalar_lea.sflag [#allocation5], %s191
        %s193 = sand.u32 %s94, 1
        %s194 = smul.addr %s193, 64
        %s195 = scalar_lea.vmem [#allocation8], %s194
        %s196 = smul.u32 8, %s25
        %v197 = vld [vmem:[%s171] sm:$0xff]
        %v198 = vld [vmem:[#allocation6] sm:$0xff]
        %v199 = vld [vmem:[#allocation6 + $0x8] sm:$0xff]
        %v200 = vld [vmem:[#allocation6 + $0x10] sm:$0xff]
        %v201 = vld [vmem:[#allocation6 + $0x18] sm:$0xff]
        %vm202 = vcmask 261120
        %v204 = vsel %vm202, %v197, 0
        %206 = vmatprep.subr.mxu0 0.0
        %207 = vmatpush1.msra.mxu0 %v198
        %208 = vmatprep.subr.mxu0 0.0
        %209 = vmatpush1.msra.mxu0 %v199
        %210 = vmatprep.subr.mxu0 0.0
        %211 = vmatpush1.msra.mxu0 %v200
        %212 = vmatprep.subr.mxu0 0.0
        %213 = vmatpush1.msra.mxu0 %v201
        %214 = vmatprep.subr.mxu0 0.0
        %215 = vmatpush1.msra.mxu0 0.0
        %216 = vmatprep.subr.mxu0 0.0
        %217 = vmatpush1.msra.mxu0 0.0
        %218 = vmatprep.subr.mxu0 0.0
        %219 = vmatpush1.msra.mxu0 0.0
        %220 = vmatprep.subr.mxu0 0.0
        %221 = vmatpush1.msra.mxu0 0.0
        %222 = vmatprep.subr.mxu0 0.0
        %223 = vmatpush1.msra.mxu0 0.0
        %224 = vmatprep.subr.mxu0 0.0
        %225 = vmatpush1.msra.mxu0 0.0
        %226 = vmatprep.subr.mxu0 0.0
        %227 = vmatpush1.msra.mxu0 0.0
        %228 = vmatprep.subr.mxu0 0.0
        %229 = vmatpush1.msra.mxu0 0.0
        %230 = vmatprep.subr.mxu0 0.0
        %231 = vmatpush1.msra.mxu0 0.0
        %232 = vmatprep.subr.mxu0 0.0
        %233 = vmatpush1.msra.mxu0 0.0
        %234 = vmatprep.subr.mxu0 0.0
        %235 = vmatpush1.msra.mxu0 0.0
        %236 = vmatprep.subr.mxu0 0.0
        %237 = vmatpush1.msra.mxu0 0.0
        %238 = vmatprep.subr.mxu0 0.0
        %239 = vmatpush1.msra.mxu0 0.0
        %240 = vmatprep.subr.mxu0 0.0
        %241 = vmatpush1.msra.mxu0 0.0
        %242 = vmatprep.subr.mxu0 0.0
        %243 = vmatpush1.msra.mxu0 0.0
        %244 = vmatprep.subr.mxu0 0.0
        %245 = vmatpush1.msra.mxu0 0.0
        %246 = vmatprep.subr.mxu0 0.0
        %247 = vmatpush1.msra.mxu0 0.0
        %248 = vmatprep.subr.mxu0 0.0
        %249 = vmatpush1.msra.mxu0 0.0
        %250 = vmatprep.subr.mxu0 0.0
        %251 = vmatpush1.msra.mxu0 0.0
        %252 = vmatprep.subr.mxu0 0.0
        %253 = vmatpush1.msra.mxu0 0.0
        %254 = vmatprep.subr.mxu0 0.0
        %255 = vmatpush1.msra.mxu0 0.0
        %256 = vmatprep.subr.mxu0 0.0
        %257 = vmatpush1.msra.mxu0 0.0
        %258 = vmatprep.subr.mxu0 0.0
        %259 = vmatpush1.msra.mxu0 0.0
        %260 = vmatprep.subr.mxu0 0.0
        %261 = vmatpush1.msra.mxu0 0.0
        %262 = vmatprep.subr.mxu0 0.0
        %263 = vmatpush1.msra.mxu0 0.0
        %264 = vmatprep.subr.mxu0 0.0
        %265 = vmatpush1.msra.mxu0 0.0
        %266 = vmatprep.subr.mxu0 0.0
        %267 = vmatpush1.msra.mxu0 0.0
        %268 = vmatprep.subr.mxu0 0.0
        %269 = vmatpush1.msra.mxu0 0.0
        %270 = vmatprep.mubr.f32.mxu0 0.0
        %271 = vmatmul.mubr.f32.gmra.mrb[0].mxu0 %v204
        %v272 = vpop.f32.mrb[0].mxu0
        %v273 = vadd.f32 0.0, %v272
        %v274 = vpop.f32.mrb[0].mxu0
        %275 = vdwg.mxu0
        %vm276 = vcmask 523264
        %277 = vst.msk [vmem:[#allocation2] sm:$0xff] %vm276, %v273
        %v278 = vld [vmem:[#allocation2] sm:$0xff]
        %280 = vrot.lane.b32.xlu0 %v278, 96
        %v281 = vpop.permute.xlu0 %280
        %vm282 = vcmask 31744
        %v283 = vsel %vm282, %v278, 0
        %v285 = vsel %vm282, %v281, 0
        %287 = vmatprep.subr.mxu0 0.0
        %288 = vmatpush1.xpose.msra.mxu0 %v285
        %289 = vmatprep.subr.mxu0 0.0
        %290 = vmatpush1.xpose.msra.mxu0 0.0
        %291 = vmatprep.subr.mxu0 0.0
        %292 = vmatpush1.xpose.msra.mxu0 0.0
        %293 = vmatprep.subr.mxu0 0.0
        %294 = vmatpush1.xpose.msra.mxu0 0.0
        %295 = vmatprep.subr.mxu0 0.0
        %296 = vmatpush1.xpose.msra.mxu0 0.0
        %297 = vmatprep.subr.mxu0 0.0
        %298 = vmatpush1.xpose.msra.mxu0 0.0
        %299 = vmatprep.subr.mxu0 0.0
        %300 = vmatpush1.xpose.msra.mxu0 0.0
        %301 = vmatprep.subr.mxu0 0.0
        %302 = vmatpush1.xpose.msra.mxu0 0.0
        %303 = vmatprep.subr.mxu0 0.0
        %304 = vmatpush1.xpose.msra.mxu0 0.0
        %305 = vmatprep.subr.mxu0 0.0
        %306 = vmatpush1.xpose.msra.mxu0 0.0
        %307 = vmatprep.subr.mxu0 0.0
        %308 = vmatpush1.xpose.msra.mxu0 0.0
        %309 = vmatprep.subr.mxu0 0.0
        %310 = vmatpush1.xpose.msra.mxu0 0.0
        %311 = vmatprep.subr.mxu0 0.0
        %312 = vmatpush1.xpose.msra.mxu0 0.0
        %313 = vmatprep.subr.mxu0 0.0
        %314 = vmatpush1.xpose.msra.mxu0 0.0
        %315 = vmatprep.subr.mxu0 0.0
        %316 = vmatpush1.xpose.msra.mxu0 0.0
        %317 = vmatprep.subr.mxu0 0.0
        %318 = vmatpush1.xpose.msra.mxu0 0.0
        %319 = vmatprep.subr.mxu0 0.0
        %320 = vmatpush1.xpose.msra.mxu0 0.0
        %321 = vmatprep.subr.mxu0 0.0
        %322 = vmatpush1.xpose.msra.mxu0 0.0
        %323 = vmatprep.subr.mxu0 0.0
        %324 = vmatpush1.xpose.msra.mxu0 0.0
        %325 = vmatprep.subr.mxu0 0.0
        %326 = vmatpush1.xpose.msra.mxu0 0.0
        %327 = vmatprep.subr.mxu0 0.0
        %328 = vmatpush1.xpose.msra.mxu0 0.0
        %329 = vmatprep.subr.mxu0 0.0
        %330 = vmatpush1.xpose.msra.mxu0 0.0
        %331 = vmatprep.subr.mxu0 0.0
        %332 = vmatpush1.xpose.msra.mxu0 0.0
        %333 = vmatprep.subr.mxu0 0.0
        %334 = vmatpush1.xpose.msra.mxu0 0.0
        %335 = vmatprep.subr.mxu0 0.0
        %336 = vmatpush1.xpose.msra.mxu0 0.0
        %337 = vmatprep.subr.mxu0 0.0
        %338 = vmatpush1.xpose.msra.mxu0 0.0
        %339 = vmatprep.subr.mxu0 0.0
        %340 = vmatpush1.xpose.msra.mxu0 0.0
        %341 = vmatprep.subr.mxu0 0.0
        %342 = vmatpush1.xpose.msra.mxu0 0.0
        %343 = vmatprep.subr.mxu0 0.0
        %344 = vmatpush1.xpose.msra.mxu0 0.0
        %345 = vmatprep.subr.mxu0 0.0
        %346 = vmatpush1.xpose.msra.mxu0 0.0
        %347 = vmatprep.subr.mxu0 0.0
        %348 = vmatpush1.xpose.msra.mxu0 0.0
        %349 = vmatprep.subr.mxu0 0.0
        %350 = vmatpush1.xpose.msra.mxu0 0.0
        %351 = vmatprep.mubr.f32.mxu0 0.0
        %352 = vmatmul.mubr.f32.gmra.mrb[0].mxu0 %v283
        %v353 = vpop.f32.mrb[0].mxu0
        %v354 = vadd.f32 0.0, %v353
        %v355 = vpop.f32.mrb[0].mxu0
        %356 = vdwg.mxu0
        %vm357 = vcmask 64512
        %v358 = vsel %vm357, %v354, -inf
        %359 = vmax.xlane.f32.xlu0 %v358
        %v360 = vpop.xlane.xlu0 %359
        %v361 = vsub.f32 %v354, %v360
        %v362 = vmul.f32 %v361, 1.442695
        %v363 = vpow.pop %v362
        %v364 = vsel %vm357, %v363, 0.0
        %365 = vadd.xlane.f32.xlu0 %v364
        %v366 = vpop.xlane.xlu0 %365
        %v367 = vrcp.pop %v366
        %v368 = vmul.f32 %v363, %v367
        %369 = vst.msk [vmem:[%s195] sm:$0xff] %vm357, %v368
        %v370 = vld [vmem:[#allocation2] sm:$0xff]
        %372 = vrot.lane.b32.xlu0 %v370, 124
        %v373 = vpop.permute.xlu0 %372
        %374 = vrot.lane.b32.xlu0 %v370, 92
        %v375 = vpop.permute.xlu0 %374
        %v376 = vsel %vm282, %v373, 0
        %v378 = vsel %vm282, %v375, 0
        %380 = vmatprep.subr.mxu0 0.0
        %381 = vmatpush1.xpose.msra.mxu0 %v378
        %382 = vmatprep.subr.mxu0 0.0
        %383 = vmatpush1.xpose.msra.mxu0 0.0
        %384 = vmatprep.subr.mxu0 0.0
        %385 = vmatpush1.xpose.msra.mxu0 0.0
        %386 = vmatprep.subr.mxu0 0.0
        %387 = vmatpush1.xpose.msra.mxu0 0.0
        %388 = vmatprep.subr.mxu0 0.0
        %389 = vmatpush1.xpose.msra.mxu0 0.0
        %390 = vmatprep.subr.mxu0 0.0
        %391 = vmatpush1.xpose.msra.mxu0 0.0
        %392 = vmatprep.subr.mxu0 0.0
        %393 = vmatpush1.xpose.msra.mxu0 0.0
        %394 = vmatprep.subr.mxu0 0.0
        %395 = vmatpush1.xpose.msra.mxu0 0.0
        %396 = vmatprep.subr.mxu0 0.0
        %397 = vmatpush1.xpose.msra.mxu0 0.0
        %398 = vmatprep.subr.mxu0 0.0
        %399 = vmatpush1.xpose.msra.mxu0 0.0
        %400 = vmatprep.subr.mxu0 0.0
        %401 = vmatpush1.xpose.msra.mxu0 0.0
        %402 = vmatprep.subr.mxu0 0.0
        %403 = vmatpush1.xpose.msra.mxu0 0.0
        %404 = vmatprep.subr.mxu0 0.0
        %405 = vmatpush1.xpose.msra.mxu0 0.0
        %406 = vmatprep.subr.mxu0 0.0
        %407 = vmatpush1.xpose.msra.mxu0 0.0
        %408 = vmatprep.subr.mxu0 0.0
        %409 = vmatpush1.xpose.msra.mxu0 0.0
        %410 = vmatprep.subr.mxu0 0.0
        %411 = vmatpush1.xpose.msra.mxu0 0.0
        %412 = vmatprep.subr.mxu0 0.0
        %413 = vmatpush1.xpose.msra.mxu0 0.0
        %414 = vmatprep.subr.mxu0 0.0
        %415 = vmatpush1.xpose.msra.mxu0 0.0
        %416 = vmatprep.subr.mxu0 0.0
        %417 = vmatpush1.xpose.msra.mxu0 0.0
        %418 = vmatprep.subr.mxu0 0.0
        %419 = vmatpush1.xpose.msra.mxu0 0.0
        %420 = vmatprep.subr.mxu0 0.0
        %421 = vmatpush1.xpose.msra.mxu0 0.0
        %422 = vmatprep.subr.mxu0 0.0
        %423 = vmatpush1.xpose.msra.mxu0 0.0
        %424 = vmatprep.subr.mxu0 0.0
        %425 = vmatpush1.xpose.msra.mxu0 0.0
        %426 = vmatprep.subr.mxu0 0.0
        %427 = vmatpush1.xpose.msra.mxu0 0.0
        %428 = vmatprep.subr.mxu0 0.0
        %429 = vmatpush1.xpose.msra.mxu0 0.0
        %430 = vmatprep.subr.mxu0 0.0
        %431 = vmatpush1.xpose.msra.mxu0 0.0
        %432 = vmatprep.subr.mxu0 0.0
        %433 = vmatpush1.xpose.msra.mxu0 0.0
        %434 = vmatprep.subr.mxu0 0.0
        %435 = vmatpush1.xpose.msra.mxu0 0.0
        %436 = vmatprep.subr.mxu0 0.0
        %437 = vmatpush1.xpose.msra.mxu0 0.0
        %438 = vmatprep.subr.mxu0 0.0
        %439 = vmatpush1.xpose.msra.mxu0 0.0
        %440 = vmatprep.subr.mxu0 0.0
        %441 = vmatpush1.xpose.msra.mxu0 0.0
        %442 = vmatprep.subr.mxu0 0.0
        %443 = vmatpush1.xpose.msra.mxu0 0.0
        %444 = vmatprep.mubr.f32.mxu0 0.0
        %445 = vmatmul.mubr.f32.gmra.mrb[0].mxu0 %v376
        %v446 = vpop.f32.mrb[0].mxu0
        %v447 = vadd.f32 0.0, %v446
        %v448 = vpop.f32.mrb[0].mxu0
        %449 = vdwg.mxu0
        %v450 = vsel %vm357, %v447, -inf
        %451 = vmax.xlane.f32.xlu0 %v450
        %v452 = vpop.xlane.xlu0 %451
        %v453 = vsub.f32 %v447, %v452
        %v454 = vmul.f32 %v453, 1.442695
        %v455 = vpow.pop %v454
        %v456 = vsel %vm357, %v455, 0.0
        %457 = vadd.xlane.f32.xlu0 %v456
        %v458 = vpop.xlane.xlu0 %457
        %v459 = vrcp.pop %v458
        %v460 = vmul.f32 %v455, %v459
        %s461 = scalar_lea.vmem %s195, 8 [#allocation8]
        %462 = vst.msk [vmem:[%s461] sm:$0xff] %vm357, %v460
        %v463 = vld [vmem:[#allocation2] sm:$0xff]
        %465 = vrot.lane.b32.xlu0 %v463, 120
        %v466 = vpop.permute.xlu0 %465
        %467 = vrot.lane.b32.xlu0 %v463, 88
        %v468 = vpop.permute.xlu0 %467
        %v469 = vsel %vm282, %v466, 0
        %v471 = vsel %vm282, %v468, 0
        %473 = vmatprep.subr.mxu0 0.0
        %474 = vmatpush1.xpose.msra.mxu0 %v471
        %475 = vmatprep.subr.mxu0 0.0
        %476 = vmatpush1.xpose.msra.mxu0 0.0
        %477 = vmatprep.subr.mxu0 0.0
        %478 = vmatpush1.xpose.msra.mxu0 0.0
        %479 = vmatprep.subr.mxu0 0.0
        %480 = vmatpush1.xpose.msra.mxu0 0.0
        %481 = vmatprep.subr.mxu0 0.0
        %482 = vmatpush1.xpose.msra.mxu0 0.0
        %483 = vmatprep.subr.mxu0 0.0
        %484 = vmatpush1.xpose.msra.mxu0 0.0
        %485 = vmatprep.subr.mxu0 0.0
        %486 = vmatpush1.xpose.msra.mxu0 0.0
        %487 = vmatprep.subr.mxu0 0.0
        %488 = vmatpush1.xpose.msra.mxu0 0.0
        %489 = vmatprep.subr.mxu0 0.0
        %490 = vmatpush1.xpose.msra.mxu0 0.0
        %491 = vmatprep.subr.mxu0 0.0
        %492 = vmatpush1.xpose.msra.mxu0 0.0
        %493 = vmatprep.subr.mxu0 0.0
        %494 = vmatpush1.xpose.msra.mxu0 0.0
        %495 = vmatprep.subr.mxu0 0.0
        %496 = vmatpush1.xpose.msra.mxu0 0.0
        %497 = vmatprep.subr.mxu0 0.0
        %498 = vmatpush1.xpose.msra.mxu0 0.0
        %499 = vmatprep.subr.mxu0 0.0
        %500 = vmatpush1.xpose.msra.mxu0 0.0
        %501 = vmatprep.subr.mxu0 0.0
        %502 = vmatpush1.xpose.msra.mxu0 0.0
        %503 = vmatprep.subr.mxu0 0.0
        %504 = vmatpush1.xpose.msra.mxu0 0.0
        %505 = vmatprep.subr.mxu0 0.0
        %506 = vmatpush1.xpose.msra.mxu0 0.0
        %507 = vmatprep.subr.mxu0 0.0
        %508 = vmatpush1.xpose.msra.mxu0 0.0
        %509 = vmatprep.subr.mxu0 0.0
        %510 = vmatpush1.xpose.msra.mxu0 0.0
        %511 = vmatprep.subr.mxu0 0.0
        %512 = vmatpush1.xpose.msra.mxu0 0.0
        %513 = vmatprep.subr.mxu0 0.0
        %514 = vmatpush1.xpose.msra.mxu0 0.0
        %515 = vmatprep.subr.mxu0 0.0
        %516 = vmatpush1.xpose.msra.mxu0 0.0
        %517 = vmatprep.subr.mxu0 0.0
        %518 = vmatpush1.xpose.msra.mxu0 0.0
        %519 = vmatprep.subr.mxu0 0.0
        %520 = vmatpush1.xpose.msra.mxu0 0.0
        %521 = vmatprep.subr.mxu0 0.0
        %522 = vmatpush1.xpose.msra.mxu0 0.0
        %523 = vmatprep.subr.mxu0 0.0
        %524 = vmatpush1.xpose.msra.mxu0 0.0
        %525 = vmatprep.subr.mxu0 0.0
        %526 = vmatpush1.xpose.msra.mxu0 0.0
        %527 = vmatprep.subr.mxu0 0.0
        %528 = vmatpush1.xpose.msra.mxu0 0.0
        %529 = vmatprep.subr.mxu0 0.0
        %530 = vmatpush1.xpose.msra.mxu0 0.0
        %531 = vmatprep.subr.mxu0 0.0
        %532 = vmatpush1.xpose.msra.mxu0 0.0
        %533 = vmatprep.subr.mxu0 0.0
        %534 = vmatpush1.xpose.msra.mxu0 0.0
        %535 = vmatprep.subr.mxu0 0.0
        %536 = vmatpush1.xpose.msra.mxu0 0.0
        %537 = vmatprep.mubr.f32.mxu0 0.0
        %538 = vmatmul.mubr.f32.gmra.mrb[0].mxu0 %v469
        %v539 = vpop.f32.mrb[0].mxu0
        %v540 = vadd.f32 0.0, %v539
        %v541 = vpop.f32.mrb[0].mxu0
        %542 = vdwg.mxu0
        %v543 = vsel %vm357, %v540, -inf
        %544 = vmax.xlane.f32.xlu0 %v543
        %v545 = vpop.xlane.xlu0 %544
        %v546 = vsub.f32 %v540, %v545
        %v547 = vmul.f32 %v546, 1.442695
        %v548 = vpow.pop %v547
        %v549 = vsel %vm357, %v548, 0.0
        %550 = vadd.xlane.f32.xlu0 %v549
        %v551 = vpop.xlane.xlu0 %550
        %v552 = vrcp.pop %v551
        %v553 = vmul.f32 %v548, %v552
        %s554 = scalar_lea.vmem %s195, 16 [#allocation8]
        %555 = vst.msk [vmem:[%s554] sm:$0xff] %vm357, %v553
        %v556 = vld [vmem:[#allocation2] sm:$0xff]
        %558 = vrot.lane.b32.xlu0 %v556, 116
        %v559 = vpop.permute.xlu0 %558
        %560 = vrot.lane.b32.xlu0 %v556, 84
        %v561 = vpop.permute.xlu0 %560
        %v562 = vsel %vm282, %v559, 0
        %v564 = vsel %vm282, %v561, 0
        %566 = vmatprep.subr.mxu0 0.0
        %567 = vmatpush1.xpose.msra.mxu0 %v564
        %568 = vmatprep.subr.mxu0 0.0
        %569 = vmatpush1.xpose.msra.mxu0 0.0
        %570 = vmatprep.subr.mxu0 0.0
        %571 = vmatpush1.xpose.msra.mxu0 0.0
        %572 = vmatprep.subr.mxu0 0.0
        %573 = vmatpush1.xpose.msra.mxu0 0.0
        %574 = vmatprep.subr.mxu0 0.0
        %575 = vmatpush1.xpose.msra.mxu0 0.0
        %576 = vmatprep.subr.mxu0 0.0
        %577 = vmatpush1.xpose.msra.mxu0 0.0
        %578 = vmatprep.subr.mxu0 0.0
        %579 = vmatpush1.xpose.msra.mxu0 0.0
        %580 = vmatprep.subr.mxu0 0.0
        %581 = vmatpush1.xpose.msra.mxu0 0.0
        %582 = vmatprep.subr.mxu0 0.0
        %583 = vmatpush1.xpose.msra.mxu0 0.0
        %584 = vmatprep.subr.mxu0 0.0
        %585 = vmatpush1.xpose.msra.mxu0 0.0
        %586 = vmatprep.subr.mxu0 0.0
        %587 = vmatpush1.xpose.msra.mxu0 0.0
        %588 = vmatprep.subr.mxu0 0.0
        %589 = vmatpush1.xpose.msra.mxu0 0.0
        %590 = vmatprep.subr.mxu0 0.0
        %591 = vmatpush1.xpose.msra.mxu0 0.0
        %592 = vmatprep.subr.mxu0 0.0
        %593 = vmatpush1.xpose.msra.mxu0 0.0
        %594 = vmatprep.subr.mxu0 0.0
        %595 = vmatpush1.xpose.msra.mxu0 0.0
        %596 = vmatprep.subr.mxu0 0.0
        %597 = vmatpush1.xpose.msra.mxu0 0.0
        %598 = vmatprep.subr.mxu0 0.0
        %599 = vmatpush1.xpose.msra.mxu0 0.0
        %600 = vmatprep.subr.mxu0 0.0
        %601 = vmatpush1.xpose.msra.mxu0 0.0
        %602 = vmatprep.subr.mxu0 0.0
        %603 = vmatpush1.xpose.msra.mxu0 0.0
        %604 = vmatprep.subr.mxu0 0.0
        %605 = vmatpush1.xpose.msra.mxu0 0.0
        %606 = vmatprep.subr.mxu0 0.0
        %607 = vmatpush1.xpose.msra.mxu0 0.0
        %608 = vmatprep.subr.mxu0 0.0
        %609 = vmatpush1.xpose.msra.mxu0 0.0
        %610 = vmatprep.subr.mxu0 0.0
        %611 = vmatpush1.xpose.msra.mxu0 0.0
        %612 = vmatprep.subr.mxu0 0.0
        %613 = vmatpush1.xpose.msra.mxu0 0.0
        %614 = vmatprep.subr.mxu0 0.0
        %615 = vmatpush1.xpose.msra.mxu0 0.0
        %616 = vmatprep.subr.mxu0 0.0
        %617 = vmatpush1.xpose.msra.mxu0 0.0
        %618 = vmatprep.subr.mxu0 0.0
        %619 = vmatpush1.xpose.msra.mxu0 0.0
        %620 = vmatprep.subr.mxu0 0.0
        %621 = vmatpush1.xpose.msra.mxu0 0.0
        %622 = vmatprep.subr.mxu0 0.0
        %623 = vmatpush1.xpose.msra.mxu0 0.0
        %624 = vmatprep.subr.mxu0 0.0
        %625 = vmatpush1.xpose.msra.mxu0 0.0
        %626 = vmatprep.subr.mxu0 0.0
        %627 = vmatpush1.xpose.msra.mxu0 0.0
        %628 = vmatprep.subr.mxu0 0.0
        %629 = vmatpush1.xpose.msra.mxu0 0.0
        %630 = vmatprep.mubr.f32.mxu0 0.0
        %631 = vmatmul.mubr.f32.gmra.mrb[0].mxu0 %v562
        %v632 = vpop.f32.mrb[0].mxu0
        %v633 = vadd.f32 0.0, %v632
        %v634 = vpop.f32.mrb[0].mxu0
        %635 = vdwg.mxu0
        %v636 = vsel %vm357, %v633, -inf
        %637 = vmax.xlane.f32.xlu0 %v636
        %v638 = vpop.xlane.xlu0 %637
        %v639 = vsub.f32 %v633, %v638
        %v640 = vmul.f32 %v639, 1.442695
        %v641 = vpow.pop %v640
        %v642 = vsel %vm357, %v641, 0.0
        %643 = vadd.xlane.f32.xlu0 %v642
        %v644 = vpop.xlane.xlu0 %643
        %v645 = vrcp.pop %v644
        %v646 = vmul.f32 %v641, %v645
        %s647 = scalar_lea.vmem %s195, 24 [#allocation8]
        %648 = vst.msk [vmem:[%s647] sm:$0xff] %vm357, %v646
        %v649 = vld [vmem:[#allocation2] sm:$0xff]
        %651 = vrot.lane.b32.xlu0 %v649, 112
        %v652 = vpop.permute.xlu0 %651
        %653 = vrot.lane.b32.xlu0 %v649, 80
        %v654 = vpop.permute.xlu0 %653
        %v655 = vsel %vm282, %v652, 0
        %v657 = vsel %vm282, %v654, 0
        %659 = vmatprep.subr.mxu0 0.0
        %660 = vmatpush1.xpose.msra.mxu0 %v657
        %661 = vmatprep.subr.mxu0 0.0
        %662 = vmatpush1.xpose.msra.mxu0 0.0
        %663 = vmatprep.subr.mxu0 0.0
        %664 = vmatpush1.xpose.msra.mxu0 0.0
        %665 = vmatprep.subr.mxu0 0.0
        %666 = vmatpush1.xpose.msra.mxu0 0.0
        %667 = vmatprep.subr.mxu0 0.0
        %668 = vmatpush1.xpose.msra.mxu0 0.0
        %669 = vmatprep.subr.mxu0 0.0
        %670 = vmatpush1.xpose.msra.mxu0 0.0
        %671 = vmatprep.subr.mxu0 0.0
        %672 = vmatpush1.xpose.msra.mxu0 0.0
        %673 = vmatprep.subr.mxu0 0.0
        %674 = vmatpush1.xpose.msra.mxu0 0.0
        %675 = vmatprep.subr.mxu0 0.0
        %676 = vmatpush1.xpose.msra.mxu0 0.0
        %677 = vmatprep.subr.mxu0 0.0
        %678 = vmatpush1.xpose.msra.mxu0 0.0
        %679 = vmatprep.subr.mxu0 0.0
        %680 = vmatpush1.xpose.msra.mxu0 0.0
        %681 = vmatprep.subr.mxu0 0.0
        %682 = vmatpush1.xpose.msra.mxu0 0.0
        %683 = vmatprep.subr.mxu0 0.0
        %684 = vmatpush1.xpose.msra.mxu0 0.0
        %685 = vmatprep.subr.mxu0 0.0
        %686 = vmatpush1.xpose.msra.mxu0 0.0
        %687 = vmatprep.subr.mxu0 0.0
        %688 = vmatpush1.xpose.msra.mxu0 0.0
        %689 = vmatprep.subr.mxu0 0.0
        %690 = vmatpush1.xpose.msra.mxu0 0.0
        %691 = vmatprep.subr.mxu0 0.0
        %692 = vmatpush1.xpose.msra.mxu0 0.0
        %693 = vmatprep.subr.mxu0 0.0
        %694 = vmatpush1.xpose.msra.mxu0 0.0
        %695 = vmatprep.subr.mxu0 0.0
        %696 = vmatpush1.xpose.msra.mxu0 0.0
        %697 = vmatprep.subr.mxu0 0.0
        %698 = vmatpush1.xpose.msra.mxu0 0.0
        %699 = vmatprep.subr.mxu0 0.0
        %700 = vmatpush1.xpose.msra.mxu0 0.0
        %701 = vmatprep.subr.mxu0 0.0
        %702 = vmatpush1.xpose.msra.mxu0 0.0
        %703 = vmatprep.subr.mxu0 0.0
        %704 = vmatpush1.xpose.msra.mxu0 0.0
        %705 = vmatprep.subr.mxu0 0.0
        %706 = vmatpush1.xpose.msra.mxu0 0.0
        %707 = vmatprep.subr.mxu0 0.0
        %708 = vmatpush1.xpose.msra.mxu0 0.0
        %709 = vmatprep.subr.mxu0 0.0
        %710 = vmatpush1.xpose.msra.mxu0 0.0
        %711 = vmatprep.subr.mxu0 0.0
        %712 = vmatpush1.xpose.msra.mxu0 0.0
        %713 = vmatprep.subr.mxu0 0.0
        %714 = vmatpush1.xpose.msra.mxu0 0.0
        %715 = vmatprep.subr.mxu0 0.0
        %716 = vmatpush1.xpose.msra.mxu0 0.0
        %717 = vmatprep.subr.mxu0 0.0
        %718 = vmatpush1.xpose.msra.mxu0 0.0
        %719 = vmatprep.subr.mxu0 0.0
        %720 = vmatpush1.xpose.msra.mxu0 0.0
        %721 = vmatprep.subr.mxu0 0.0
        %722 = vmatpush1.xpose.msra.mxu0 0.0
        %723 = vmatprep.mubr.f32.mxu0 0.0
        %724 = vmatmul.mubr.f32.gmra.mrb[0].mxu0 %v655
        %v725 = vpop.f32.mrb[0].mxu0
        %v726 = vadd.f32 0.0, %v725
        %v727 = vpop.f32.mrb[0].mxu0
        %728 = vdwg.mxu0
        %v729 = vsel %vm357, %v726, -inf
        %730 = vmax.xlane.f32.xlu0 %v729
        %v731 = vpop.xlane.xlu0 %730
        %v732 = vsub.f32 %v726, %v731
        %v733 = vmul.f32 %v732, 1.442695
        %v734 = vpow.pop %v733
        %v735 = vsel %vm357, %v734, 0.0
        %736 = vadd.xlane.f32.xlu0 %v735
        %v737 = vpop.xlane.xlu0 %736
        %v738 = vrcp.pop %v737
        %v739 = vmul.f32 %v734, %v738
        %s740 = scalar_lea.vmem %s195, 32 [#allocation8]
        %741 = vst.msk [vmem:[%s740] sm:$0xff] %vm357, %v739
        %v742 = vld [vmem:[#allocation2] sm:$0xff]
        %744 = vrot.lane.b32.xlu0 %v742, 108
        %v745 = vpop.permute.xlu0 %744
        %746 = vrot.lane.b32.xlu0 %v742, 76
        %v747 = vpop.permute.xlu0 %746
        %v748 = vsel %vm282, %v745, 0
        %v750 = vsel %vm282, %v747, 0
        %752 = vmatprep.subr.mxu0 0.0
        %753 = vmatpush1.xpose.msra.mxu0 %v750
        %754 = vmatprep.subr.mxu0 0.0
        %755 = vmatpush1.xpose.msra.mxu0 0.0
        %756 = vmatprep.subr.mxu0 0.0
        %757 = vmatpush1.xpose.msra.mxu0 0.0
        %758 = vmatprep.subr.mxu0 0.0
        %759 = vmatpush1.xpose.msra.mxu0 0.0
        %760 = vmatprep.subr.mxu0 0.0
        %761 = vmatpush1.xpose.msra.mxu0 0.0
        %762 = vmatprep.subr.mxu0 0.0
        %763 = vmatpush1.xpose.msra.mxu0 0.0
        %764 = vmatprep.subr.mxu0 0.0
        %765 = vmatpush1.xpose.msra.mxu0 0.0
        %766 = vmatprep.subr.mxu0 0.0
        %767 = vmatpush1.xpose.msra.mxu0 0.0
        %768 = vmatprep.subr.mxu0 0.0
        %769 = vmatpush1.xpose.msra.mxu0 0.0
        %770 = vmatprep.subr.mxu0 0.0
        %771 = vmatpush1.xpose.msra.mxu0 0.0
        %772 = vmatprep.subr.mxu0 0.0
        %773 = vmatpush1.xpose.msra.mxu0 0.0
        %774 = vmatprep.subr.mxu0 0.0
        %775 = vmatpush1.xpose.msra.mxu0 0.0
        %776 = vmatprep.subr.mxu0 0.0
        %777 = vmatpush1.xpose.msra.mxu0 0.0
        %778 = vmatprep.subr.mxu0 0.0
        %779 = vmatpush1.xpose.msra.mxu0 0.0
        %780 = vmatprep.subr.mxu0 0.0
        %781 = vmatpush1.xpose.msra.mxu0 0.0
        %782 = vmatprep.subr.mxu0 0.0
        %783 = vmatpush1.xpose.msra.mxu0 0.0
        %784 = vmatprep.subr.mxu0 0.0
        %785 = vmatpush1.xpose.msra.mxu0 0.0
        %786 = vmatprep.subr.mxu0 0.0
        %787 = vmatpush1.xpose.msra.mxu0 0.0
        %788 = vmatprep.subr.mxu0 0.0
        %789 = vmatpush1.xpose.msra.mxu0 0.0
        %790 = vmatprep.subr.mxu0 0.0
        %791 = vmatpush1.xpose.msra.mxu0 0.0
        %792 = vmatprep.subr.mxu0 0.0
        %793 = vmatpush1.xpose.msra.mxu0 0.0
        %794 = vmatprep.subr.mxu0 0.0
        %795 = vmatpush1.xpose.msra.mxu0 0.0
        %796 = vmatprep.subr.mxu0 0.0
        %797 = vmatpush1.xpose.msra.mxu0 0.0
        %798 = vmatprep.subr.mxu0 0.0
        %799 = vmatpush1.xpose.msra.mxu0 0.0
        %800 = vmatprep.subr.mxu0 0.0
        %801 = vmatpush1.xpose.msra.mxu0 0.0
        %802 = vmatprep.subr.mxu0 0.0
        %803 = vmatpush1.xpose.msra.mxu0 0.0
        %804 = vmatprep.subr.mxu0 0.0
        %805 = vmatpush1.xpose.msra.mxu0 0.0
        %806 = vmatprep.subr.mxu0 0.0
        %807 = vmatpush1.xpose.msra.mxu0 0.0
        %808 = vmatprep.subr.mxu0 0.0
        %809 = vmatpush1.xpose.msra.mxu0 0.0
        %810 = vmatprep.subr.mxu0 0.0
        %811 = vmatpush1.xpose.msra.mxu0 0.0
        %812 = vmatprep.subr.mxu0 0.0
        %813 = vmatpush1.xpose.msra.mxu0 0.0
        %814 = vmatprep.subr.mxu0 0.0
        %815 = vmatpush1.xpose.msra.mxu0 0.0
        %816 = vmatprep.mubr.f32.mxu0 0.0
        %817 = vmatmul.mubr.f32.gmra.mrb[0].mxu0 %v748
        %v818 = vpop.f32.mrb[0].mxu0
        %v819 = vadd.f32 0.0, %v818
        %v820 = vpop.f32.mrb[0].mxu0
        %821 = vdwg.mxu0
        %v822 = vsel %vm357, %v819, -inf
        %823 = vmax.xlane.f32.xlu0 %v822
        %v824 = vpop.xlane.xlu0 %823
        %v825 = vsub.f32 %v819, %v824
        %v826 = vmul.f32 %v825, 1.442695
        %v827 = vpow.pop %v826
        %v828 = vsel %vm357, %v827, 0.0
        %829 = vadd.xlane.f32.xlu0 %v828
        %v830 = vpop.xlane.xlu0 %829
        %v831 = vrcp.pop %v830
        %v832 = vmul.f32 %v827, %v831
        %s833 = scalar_lea.vmem %s195, 40 [#allocation8]
        %834 = vst.msk [vmem:[%s833] sm:$0xff] %vm357, %v832
        %v835 = vld [vmem:[#allocation2] sm:$0xff]
        %837 = vrot.lane.b32.xlu0 %v835, 104
        %v838 = vpop.permute.xlu0 %837
        %839 = vrot.lane.b32.xlu0 %v835, 72
        %v840 = vpop.permute.xlu0 %839
        %v841 = vsel %vm282, %v838, 0
        %v843 = vsel %vm282, %v840, 0
        %845 = vmatprep.subr.mxu0 0.0
        %846 = vmatpush1.xpose.msra.mxu0 %v843
        %847 = vmatprep.subr.mxu0 0.0
        %848 = vmatpush1.xpose.msra.mxu0 0.0
        %849 = vmatprep.subr.mxu0 0.0
        %850 = vmatpush1.xpose.msra.mxu0 0.0
        %851 = vmatprep.subr.mxu0 0.0
        %852 = vmatpush1.xpose.msra.mxu0 0.0
        %853 = vmatprep.subr.mxu0 0.0
        %854 = vmatpush1.xpose.msra.mxu0 0.0
        %855 = vmatprep.subr.mxu0 0.0
        %856 = vmatpush1.xpose.msra.mxu0 0.0
        %857 = vmatprep.subr.mxu0 0.0
        %858 = vmatpush1.xpose.msra.mxu0 0.0
        %859 = vmatprep.subr.mxu0 0.0
        %860 = vmatpush1.xpose.msra.mxu0 0.0
        %861 = vmatprep.subr.mxu0 0.0
        %862 = vmatpush1.xpose.msra.mxu0 0.0
        %863 = vmatprep.subr.mxu0 0.0
        %864 = vmatpush1.xpose.msra.mxu0 0.0
        %865 = vmatprep.subr.mxu0 0.0
        %866 = vmatpush1.xpose.msra.mxu0 0.0
        %867 = vmatprep.subr.mxu0 0.0
        %868 = vmatpush1.xpose.msra.mxu0 0.0
        %869 = vmatprep.subr.mxu0 0.0
        %870 = vmatpush1.xpose.msra.mxu0 0.0
        %871 = vmatprep.subr.mxu0 0.0
        %872 = vmatpush1.xpose.msra.mxu0 0.0
        %873 = vmatprep.subr.mxu0 0.0
        %874 = vmatpush1.xpose.msra.mxu0 0.0
        %875 = vmatprep.subr.mxu0 0.0
        %876 = vmatpush1.xpose.msra.mxu0 0.0
        %877 = vmatprep.subr.mxu0 0.0
        %878 = vmatpush1.xpose.msra.mxu0 0.0
        %879 = vmatprep.subr.mxu0 0.0
        %880 = vmatpush1.xpose.msra.mxu0 0.0
        %881 = vmatprep.subr.mxu0 0.0
        %882 = vmatpush1.xpose.msra.mxu0 0.0
        %883 = vmatprep.subr.mxu0 0.0
        %884 = vmatpush1.xpose.msra.mxu0 0.0
        %885 = vmatprep.subr.mxu0 0.0
        %886 = vmatpush1.xpose.msra.mxu0 0.0
        %887 = vmatprep.subr.mxu0 0.0
        %888 = vmatpush1.xpose.msra.mxu0 0.0
        %889 = vmatprep.subr.mxu0 0.0
        %890 = vmatpush1.xpose.msra.mxu0 0.0
        %891 = vmatprep.subr.mxu0 0.0
        %892 = vmatpush1.xpose.msra.mxu0 0.0
        %893 = vmatprep.subr.mxu0 0.0
        %894 = vmatpush1.xpose.msra.mxu0 0.0
        %895 = vmatprep.subr.mxu0 0.0
        %896 = vmatpush1.xpose.msra.mxu0 0.0
        %897 = vmatprep.subr.mxu0 0.0
        %898 = vmatpush1.xpose.msra.mxu0 0.0
        %899 = vmatprep.subr.mxu0 0.0
        %900 = vmatpush1.xpose.msra.mxu0 0.0
        %901 = vmatprep.subr.mxu0 0.0
        %902 = vmatpush1.xpose.msra.mxu0 0.0
        %903 = vmatprep.subr.mxu0 0.0
        %904 = vmatpush1.xpose.msra.mxu0 0.0
        %905 = vmatprep.subr.mxu0 0.0
        %906 = vmatpush1.xpose.msra.mxu0 0.0
        %907 = vmatprep.subr.mxu0 0.0
        %908 = vmatpush1.xpose.msra.mxu0 0.0
        %909 = vmatprep.mubr.f32.mxu0 0.0
        %910 = vmatmul.mubr.f32.gmra.mrb[0].mxu0 %v841
        %v911 = vpop.f32.mrb[0].mxu0
        %v912 = vadd.f32 0.0, %v911
        %v913 = vpop.f32.mrb[0].mxu0
        %914 = vdwg.mxu0
        %v915 = vsel %vm357, %v912, -inf
        %916 = vmax.xlane.f32.xlu0 %v915
        %v917 = vpop.xlane.xlu0 %916
        %v918 = vsub.f32 %v912, %v917
        %v919 = vmul.f32 %v918, 1.442695
        %v920 = vpow.pop %v919
        %v921 = vsel %vm357, %v920, 0.0
        %922 = vadd.xlane.f32.xlu0 %v921
        %v923 = vpop.xlane.xlu0 %922
        %v924 = vrcp.pop %v923
        %v925 = vmul.f32 %v920, %v924
        %s926 = scalar_lea.vmem %s195, 48 [#allocation8]
        %927 = vst.msk [vmem:[%s926] sm:$0xff] %vm357, %v925
        %v928 = vld [vmem:[#allocation2] sm:$0xff]
        %930 = vrot.lane.b32.xlu0 %v928, 100
        %v931 = vpop.permute.xlu0 %930
        %932 = vrot.lane.b32.xlu0 %v928, 68
        %v933 = vpop.permute.xlu0 %932
        %v934 = vsel %vm282, %v931, 0
        %v936 = vsel %vm282, %v933, 0
        %938 = vmatprep.subr.mxu0 0.0
        %939 = vmatpush1.xpose.msra.mxu0 %v936
        %940 = vmatprep.subr.mxu0 0.0
        %941 = vmatpush1.xpose.msra.mxu0 0.0
        %942 = vmatprep.subr.mxu0 0.0
        %943 = vmatpush1.xpose.msra.mxu0 0.0
        %944 = vmatprep.subr.mxu0 0.0
        %945 = vmatpush1.xpose.msra.mxu0 0.0
        %946 = vmatprep.subr.mxu0 0.0
        %947 = vmatpush1.xpose.msra.mxu0 0.0
        %948 = vmatprep.subr.mxu0 0.0
        %949 = vmatpush1.xpose.msra.mxu0 0.0
        %950 = vmatprep.subr.mxu0 0.0
        %951 = vmatpush1.xpose.msra.mxu0 0.0
        %952 = vmatprep.subr.mxu0 0.0
        %953 = vmatpush1.xpose.msra.mxu0 0.0
        %954 = vmatprep.subr.mxu0 0.0
        %955 = vmatpush1.xpose.msra.mxu0 0.0
        %956 = vmatprep.subr.mxu0 0.0
        %957 = vmatpush1.xpose.msra.mxu0 0.0
        %958 = vmatprep.subr.mxu0 0.0
        %959 = vmatpush1.xpose.msra.mxu0 0.0
        %960 = vmatprep.subr.mxu0 0.0
        %961 = vmatpush1.xpose.msra.mxu0 0.0
        %962 = vmatprep.subr.mxu0 0.0
        %963 = vmatpush1.xpose.msra.mxu0 0.0
        %964 = vmatprep.subr.mxu0 0.0
        %965 = vmatpush1.xpose.msra.mxu0 0.0
        %966 = vmatprep.subr.mxu0 0.0
        %967 = vmatpush1.xpose.msra.mxu0 0.0
        %968 = vmatprep.subr.mxu0 0.0
        %969 = vmatpush1.xpose.msra.mxu0 0.0
        %970 = vmatprep.subr.mxu0 0.0
        %971 = vmatpush1.xpose.msra.mxu0 0.0
        %972 = vmatprep.subr.mxu0 0.0
        %973 = vmatpush1.xpose.msra.mxu0 0.0
        %974 = vmatprep.subr.mxu0 0.0
        %975 = vmatpush1.xpose.msra.mxu0 0.0
        %976 = vmatprep.subr.mxu0 0.0
        %977 = vmatpush1.xpose.msra.mxu0 0.0
        %978 = vmatprep.subr.mxu0 0.0
        %979 = vmatpush1.xpose.msra.mxu0 0.0
        %980 = vmatprep.subr.mxu0 0.0
        %981 = vmatpush1.xpose.msra.mxu0 0.0
        %982 = vmatprep.subr.mxu0 0.0
        %983 = vmatpush1.xpose.msra.mxu0 0.0
        %984 = vmatprep.subr.mxu0 0.0
        %985 = vmatpush1.xpose.msra.mxu0 0.0
        %986 = vmatprep.subr.mxu0 0.0
        %987 = vmatpush1.xpose.msra.mxu0 0.0
        %988 = vmatprep.subr.mxu0 0.0
        %989 = vmatpush1.xpose.msra.mxu0 0.0
        %990 = vmatprep.subr.mxu0 0.0
        %991 = vmatpush1.xpose.msra.mxu0 0.0
        %992 = vmatprep.subr.mxu0 0.0
        %993 = vmatpush1.xpose.msra.mxu0 0.0
        %994 = vmatprep.subr.mxu0 0.0
        %995 = vmatpush1.xpose.msra.mxu0 0.0
        %996 = vmatprep.subr.mxu0 0.0
        %997 = vmatpush1.xpose.msra.mxu0 0.0
        %998 = vmatprep.subr.mxu0 0.0
        %999 = vmatpush1.xpose.msra.mxu0 0.0
        %1000 = vmatprep.subr.mxu0 0.0
        %1001 = vmatpush1.xpose.msra.mxu0 0.0
        %1002 = vmatprep.mubr.f32.mxu0 0.0
        %1003 = vmatmul.mubr.f32.gmra.mrb[0].mxu0 %v934
        %v1004 = vpop.f32.mrb[0].mxu0
        %v1005 = vadd.f32 0.0, %v1004
        %v1006 = vpop.f32.mrb[0].mxu0
        %1007 = vdwg.mxu0
        %v1008 = vsel %vm357, %v1005, -inf
        %1009 = vmax.xlane.f32.xlu0 %v1008
        %v1010 = vpop.xlane.xlu0 %1009
        %v1011 = vsub.f32 %v1005, %v1010
        %v1012 = vmul.f32 %v1011, 1.442695
        %v1013 = vpow.pop %v1012
        %v1014 = vsel %vm357, %v1013, 0.0
        %1015 = vadd.xlane.f32.xlu0 %v1014
        %v1016 = vpop.xlane.xlu0 %1015
        %v1017 = vrcp.pop %v1016
        %v1018 = vmul.f32 %v1013, %v1017
        %s1019 = scalar_lea.vmem %s195, 56 [#allocation8]
        %1020 = vst.msk [vmem:[%s1019] sm:$0xff] %vm357, %v1018
        %s1021 = sand.u32 %s94, 1
        %s1022 = scalar_lea.sflag [#allocation5], %s1021
        %s1023 = sand.u32 %s94, 1
        %s1024 = smul.addr %s1023, 64
        %s1025 = scalar_lea.vmem [#allocation8], %s1024
        // Predicated region
        $region37: #{tpu_custom_call.1} parent=27 // pred_check
          %p1026 = pneg %p104
        $region38: #{tpu_custom_call.1} parent=27 // pred_check_branch
          %1028 = sbr.rel (%p1026) target = $region40
        $region39: #{tpu_custom_call.1} parent=27 // pred_region
          %s1029 = smul.u32 8, %s25
          %s1031 = ssub.s32 1024, 1024
          %1032 = vsyncadd %s1022, %s1031
          %s1033 = smul.addr %s24, 8
          %s1034 = sadd.s32 %s1029, %s1033
          %s1035 = smul.addr %s1034, 128
          %s1036 = scalar_lea.hbm %s2, %s1035
          %s1037 = sshll.u32 %s1025, 4
          %s1038 = int_to_ptr.vmem [resolvable:$true] %s1037
          %1043 = dma.vmem_to_hbm [thread:$0]  %s1038, 1024, %s1036, %s1022, 128, 128, 8
        $region40: #{tpu_custom_call.1} parent=27 // pred_fallthru
          _
      $region28: #{tpu_custom_call.1} parent=5 // pred_fallthru
        _
      %p1044 = scmp.le.s32.totalorder 2, %s15
      // Predicated region
      $region41: #{tpu_custom_call.1} parent=5 // pred_check
        %p1045 = pneg %p1044
      $region42: #{tpu_custom_call.1} parent=5 // pred_check_branch
        %1047 = sbr.rel (%p1045) target = $region44
      $region43: #{tpu_custom_call.1} parent=5 // pred_region
        %s1048 = ssub.s32 %s15, 2
        // Predicated region
        $region45: #{tpu_custom_call.1} parent=43 // pred_check
          %p1049 = pneg %p110
        $region46: #{tpu_custom_call.1} parent=43 // pred_check_branch
          %1051 = sbr.rel (%p1049) target = $region48
        $region47: #{tpu_custom_call.1} parent=43 // pred_region
          %s1052 = sand.u32 %s95, 1
          %s1053 = scalar_lea.sflag [#allocation5], %s1052
          %s1054 = sand.u32 %s95, 1
          %s1055 = smul.addr %s1054, 64
          %s1056 = scalar_lea.vmem [#allocation8], %s1055
          %1057 = dma.done %s1053, 1024
        $region48: #{tpu_custom_call.1} parent=43 // pred_fallthru
          _
      $region44: #{tpu_custom_call.1} parent=5 // pred_fallthru
        _
    $region6: #{tpu_custom_call.1} parent=1 // loop_footer
      %s19 = sadd.s32 1, %s15
    $region7: #{tpu_custom_call.1} parent=1 // loop_footer_branch
      %14 = sbr.rel target = $region3
    $region8: #{tpu_custom_call.1} parent=1 // loop_exit
      _
    %1058 = vsyncpa [#allocation4], 1
    %s1059 = scalar_lea.sflag [#allocation4], 1
    %1060 = vsyncpa %s1059, 1
    %1061 = vsyncpa [#allocation7], 1
    %1062 = vsyncpa [#allocation5], 1
    %s1063 = scalar_lea.sflag [#allocation5], 1
    %1064 = vsyncpa %s1063, 1

</llo_original>
